<compile_context>
chip_gen: v6e
topology: v6e:2x2x1
jax: 0.10.0
libtpu: 0.0.40
codegen_flags: <defaults>
</compile_context>

<pallas_src>
import math
import functools

import jax
import jax.numpy as jnp
from jax.experimental import pallas as pl
from jax.experimental.pallas import tpu as pltpu


def _round_up(v, m):
    return ((v + m - 1) // m) * m


_TILE_VMEM_BUDGET = 20 << 20   # target per-step working set when picking the node tile


def _vmem_estimate(tile, fi_p, fo_p, n_res=0):
    """Rough double-buffered VMEM bytes for one grid step (conservative)."""
    adj = 2 * tile * tile * 4                     # f32 adj block, 2 buffers
    xin = 2 * tile * max(fi_p, fo_p) * 2          # bf16 x / support block
    w = 2 * fi_p * fo_p * 2                       # resident bf16 weight
    out = 2 * tile * fo_p * 4                     # output block (<= f32)
    acc = tile * max(fi_p, fo_p) * 4              # f32 accumulator scratch
    sres = 2 * n_res * fo_p * 2                   # per-batch resident support slab
    return adj + xin + w + out + acc + sres + 8 * fo_p


def _vmem_limit(est):
    # Generous headroom, floored at 32 MiB, capped below v7x's 64 MiB physical VMEM.
    return int(min(max(2 * est + (8 << 20), 32 << 20), 48 << 20))


# --------------------------------------------------------------------------
# Fused kernel, path 1 (F_out <= F_in):
#   acc[b, i, :] += adj[b, i, k] @ (x[b, k, :] @ W);  finalize: out = acc + bias
# --------------------------------------------------------------------------
def _fused_xw_adj_kernel(a_ref, x_ref, w_ref, b_ref, o_ref, acc_ref, *, compute_dtype):
    k = pl.program_id(2)

    @pl.when(k == 0)
    def _init():
        acc_ref[...] = jnp.zeros_like(acc_ref)

    s = jnp.dot(x_ref[0], w_ref[...], preferred_element_type=jnp.float32)
    acc_ref[...] += jnp.dot(a_ref[0].astype(compute_dtype),
                            s.astype(compute_dtype),
                            preferred_element_type=jnp.float32)

    @pl.when(k == pl.num_programs(2) - 1)
    def _finalize():
        o_ref[0] = (acc_ref[...] + b_ref[...]).astype(o_ref.dtype)


# --------------------------------------------------------------------------
# Fused kernel, path 2 (F_out > F_in):
#   acc[b, i, :] += adj[b, i, k] @ x[b, k, :];  finalize: out = acc @ W + bias
# --------------------------------------------------------------------------
def _fused_adj_xw_kernel(a_ref, x_ref, w_ref, b_ref, o_ref, acc_ref, *, compute_dtype):
    k = pl.program_id(2)

    @pl.when(k == 0)
    def _init():
        acc_ref[...] = jnp.zeros_like(acc_ref)

    acc_ref[...] += jnp.dot(a_ref[0].astype(compute_dtype), x_ref[0],
                            preferred_element_type=jnp.float32)

    @pl.when(k == pl.num_programs(2) - 1)
    def _finalize():
        out = jnp.dot(acc_ref[...].astype(compute_dtype), w_ref[...],
                      preferred_element_type=jnp.float32)
        o_ref[0] = (out + b_ref[...]).astype(o_ref.dtype)


# --------------------------------------------------------------------------
# Two-stage fallback (F_out <= F_in, many row tiles, wide F_in)
# --------------------------------------------------------------------------
def _xw_kernel(x_ref, w_ref, o_ref):
    # Stage A: support tile = x_tile @ W (stored bf16).
    # TODO(synk): K-tile this weight matmul (add a contraction grid axis + f32 acc)
    # for very large F_in * F_out where the resident W exceeds the VMEM budget.
    o_ref[0] = jnp.dot(x_ref[0], w_ref[...],
                       preferred_element_type=jnp.float32).astype(o_ref.dtype)


def _adj_support_kernel(a_ref, s_ref, b_ref, o_ref, acc_ref, *, tile, compute_dtype):
    # Stage B: acc += adj_tile @ support[k_tile]; support slab is VMEM-resident per
    # batch (block index constant across i, k), sliced in-kernel with pl.ds.
    # TODO(synk): fall back to per-k-tile support blocks when N * F_out no longer
    # fits VMEM (extremely large graphs).
    k = pl.program_id(2)

    @pl.when(k == 0)
    def _init():
        acc_ref[...] = jnp.zeros_like(acc_ref)

    start = pl.multiple_of(k * tile, tile)
    s_tile = s_ref[0, pl.ds(start, tile), :]
    acc_ref[...] += jnp.dot(a_ref[0].astype(compute_dtype), s_tile,
                            preferred_element_type=jnp.float32)

    @pl.when(k == pl.num_programs(2) - 1)
    def _finalize():
        o_ref[0] = (acc_ref[...] + b_ref[...]).astype(o_ref.dtype)


# --------------------------------------------------------------------------
# pallas_call wrappers
# --------------------------------------------------------------------------
def _call_fused_xw_adj(adj, x, w, bias, out_dtype, tile, fi_p, fo_p, compute_dtype):
    B, n_p, _ = adj.shape
    grid = (B, n_p // tile, n_p // tile)
    limit = _vmem_limit(_vmem_estimate(tile, fi_p, fo_p))
    kernel = functools.partial(_fused_xw_adj_kernel, compute_dtype=compute_dtype)
    return pl.pallas_call(
        kernel,
        out_shape=jax.ShapeDtypeStruct((B, n_p, fo_p), out_dtype),
        grid=grid,
        in_specs=[
            pl.BlockSpec((1, tile, tile), lambda b, i, k: (b, i, k)),   # adj (orig dtype)
            pl.BlockSpec((1, tile, fi_p), lambda b, i, k: (b, k, 0)),   # x
            pl.BlockSpec((fi_p, fo_p), lambda b, i, k: (0, 0)),         # W (resident)
            pl.BlockSpec((1, fo_p), lambda b, i, k: (0, 0)),            # bias
        ],
        out_specs=pl.BlockSpec((1, tile, fo_p), lambda b, i, k: (b, i, 0)),
        scratch_shapes=[pltpu.VMEM((tile, fo_p), jnp.float32)],
        compiler_params=pltpu.CompilerParams(
            dimension_semantics=("parallel", "parallel", "arbitrary"),
            vmem_limit_bytes=limit),
    )(adj, x, w, bias)


def _call_fused_adj_xw(adj, x, w, bias, out_dtype, tile, fi_p, fo_p, compute_dtype):
    B, n_p, _ = adj.shape
    grid = (B, n_p // tile, n_p // tile)
    limit = _vmem_limit(_vmem_estimate(tile, fi_p, fo_p))
    kernel = functools.partial(_fused_adj_xw_kernel, compute_dtype=compute_dtype)
    return pl.pallas_call(
        kernel,
        out_shape=jax.ShapeDtypeStruct((B, n_p, fo_p), out_dtype),
        grid=grid,
        in_specs=[
            pl.BlockSpec((1, tile, tile), lambda b, i, k: (b, i, k)),   # adj (orig dtype)
            pl.BlockSpec((1, tile, fi_p), lambda b, i, k: (b, k, 0)),   # x
            pl.BlockSpec((fi_p, fo_p), lambda b, i, k: (0, 0)),         # W (resident)
            pl.BlockSpec((1, fo_p), lambda b, i, k: (0, 0)),            # bias
        ],
        out_specs=pl.BlockSpec((1, tile, fo_p), lambda b, i, k: (b, i, 0)),
        scratch_shapes=[pltpu.VMEM((tile, fi_p), jnp.float32)],
        compiler_params=pltpu.CompilerParams(
            dimension_semantics=("parallel", "parallel", "arbitrary"),
            vmem_limit_bytes=limit),
    )(adj, x, w, bias)


def _call_xw(x, w, tile, fi_p, fo_p, compute_dtype):
    B, n_p, _ = x.shape
    grid = (B, n_p // tile)
    limit = _vmem_limit(_vmem_estimate(tile, fi_p, fo_p))
    return pl.pallas_call(
        _xw_kernel,
        out_shape=jax.ShapeDtypeStruct((B, n_p, fo_p), compute_dtype),
        grid=grid,
        in_specs=[pl.BlockSpec((1, tile, fi_p), lambda b, i: (b, i, 0)),
                  pl.BlockSpec((fi_p, fo_p), lambda b, i: (0, 0))],
        out_specs=pl.BlockSpec((1, tile, fo_p), lambda b, i: (b, i, 0)),
        compiler_params=pltpu.CompilerParams(
            dimension_semantics=("parallel", "parallel"),
            vmem_limit_bytes=limit),
    )(x, w)


def _call_adj_support(adj, support, bias, out_dtype, tile, fi_p, fo_p, compute_dtype):
    B, n_p, _ = adj.shape
    grid = (B, n_p // tile, n_p // tile)
    limit = _vmem_limit(_vmem_estimate(tile, fi_p, fo_p, n_res=n_p))
    kernel = functools.partial(_adj_support_kernel, tile=tile,
                               compute_dtype=compute_dtype)
    return pl.pallas_call(
        kernel,
        out_shape=jax.ShapeDtypeStruct((B, n_p, fo_p), out_dtype),
        grid=grid,
        in_specs=[
            pl.BlockSpec((1, tile, tile), lambda b, i, k: (b, i, k)),   # adj (orig dtype)
            pl.BlockSpec((1, n_p, fo_p), lambda b, i, k: (b, 0, 0)),    # support (resident / batch)
            pl.BlockSpec((1, fo_p), lambda b, i, k: (0, 0)),            # bias
        ],
        out_specs=pl.BlockSpec((1, tile, fo_p), lambda b, i, k: (b, i, 0)),
        scratch_shapes=[pltpu.VMEM((tile, fo_p), jnp.float32)],
        compiler_params=pltpu.CompilerParams(
            dimension_semantics=("parallel", "parallel", "arbitrary"),
            vmem_limit_bytes=limit),
    )(adj, support, bias)


# --------------------------------------------------------------------------
# Public wrapper
# --------------------------------------------------------------------------
@functools.partial(jax.jit, static_argnames=("node_tile", "compute_dtype"))
def graph_convolution(x, adj, weight, bias=None, *, node_tile=256,
                      compute_dtype=jnp.bfloat16):
    """Pallas GCN layer: bmm(adj, x @ W) [+ bias].

    x: (B, N, F_in), adj: (B, N, N), weight: (F_in, F_out), bias: (F_out,) or None.
    Returns (B, N, F_out) in x.dtype.
    """
    B, N, F_in = x.shape
    F_out = weight.shape[1]
    out_dtype = x.dtype

    # Lane-dense feature padding (multiple of 128 lanes).
    fi_p = _round_up(F_in, 128)
    fo_p = _round_up(F_out, 128)

    # ---- node tiling: small 128 quantum, tile = a divisor of padded N ----------
    if N <= node_tile:
        n_p, tile = N, N                      # single node tile, zero node padding
    else:
        n_p = _round_up(N, 128)
        max_t = (min(node_tile, n_p) // 128) * 128
        tile = 128
        for t in range(max_t, 127, -128):
            if n_p % t == 0 and _vmem_estimate(t, fi_p, fo_p) <= _TILE_VMEM_BUDGET:
                tile = t
                break
    n_i = n_p // tile

    # ---- operand prep (adjacency stays in its original dtype; no bf16 copy) ----
    xp = x.astype(compute_dtype)
    if n_p != N or fi_p != F_in:
        xp = jnp.pad(xp, ((0, 0), (0, n_p - N), (0, fi_p - F_in)))

    adjp = adj
    if n_p != N:
        # TODO(synk): mask the ragged last node tile in-kernel (iota mask / BoundedSlice)
        # instead of materializing a padded copy of the (B, N, N) adjacency.
        adjp = jnp.pad(adjp, ((0, 0), (0, n_p - N), (0, n_p - N)))

    wp = weight.astype(compute_dtype)
    if fi_p != F_in or fo_p != F_out:
        wp = jnp.pad(wp, ((0, fi_p - F_in), (0, fo_p - F_out)))

    if bias is None:
        bp = jnp.zeros((1, fo_p), jnp.float32)
    else:
        bp = jnp.pad(bias.astype(jnp.float32), (0, fo_p - F_out)).reshape(1, fo_p)

    if F_out <= F_in:
        # adj multiplies the narrower (F_out-wide) operand.
        # Fuse x@W into the adj loop when the recompute is bounded by the adj work
        # (single row tile, or F_in no wider than the node tile).
        if n_i == 1 or fi_p <= tile:
            outp = _call_fused_xw_adj(adjp, xp, wp, bp, out_dtype, tile,
                                      fi_p, fo_p, compute_dtype)
        else:
            support = _call_xw(xp, wp, tile, fi_p, fo_p, compute_dtype)
            outp = _call_adj_support(adjp, support, bp, out_dtype, tile,
                                     fi_p, fo_p, compute_dtype)
    else:
        # (adj @ x) @ W: fused, no intermediate HBM round-trip, no recompute.
        outp = _call_fused_adj_xw(adjp, xp, wp, bp, out_dtype, tile,
                                  fi_p, fo_p, compute_dtype)

    return outp[:, :N, :F_out]


def init_gcn_params(key, in_features, out_features, bias=False, dtype=jnp.float32):
    """Deterministic init mirroring reset_parameters(): U(-stdv, stdv)."""
    stdv = 1.0 / math.sqrt(out_features)
    k_w, k_b = jax.random.split(key)
    weight = jax.random.uniform(k_w, (in_features, out_features),
                                minval=-stdv, maxval=stdv, dtype=dtype)
    b = None
    if bias:
        b = jax.random.uniform(k_b, (out_features,),
                               minval=-stdv, maxval=stdv, dtype=dtype)
    return weight, b


if __name__ == "__main__":
    key = jax.random.PRNGKey(0)
    k_x, k_a, k_p, k_x2, k_a2, k_p2, k_x3, k_a3, k_p3 = jax.random.split(key, 9)

    # ---- Case 1: module defaults (bias=False), F_out <= F_in, fused path --------
    B, N, F_in, F_out = 2, 8, 32, 32
    x = jax.random.normal(k_x, (B, N, F_in), dtype=jnp.float32)
    a_raw = jax.random.uniform(k_a, (B, N, N), dtype=jnp.float32)
    adj = a_raw / jnp.sum(a_raw, axis=-1, keepdims=True)
    weight, bias = init_gcn_params(k_p, F_in, F_out, bias=False)

    out = jax.block_until_ready(graph_convolution(x, adj, weight, bias))
    ref = jnp.einsum("bij,bjk->bik", adj, x @ weight)
    assert out.shape == (B, N, F_out)
    assert jnp.allclose(out, ref, atol=2e-2, rtol=2e-2)

    # ---- Case 2: bias=True, F_out > F_in (other association order, fused) -------
    F_out2 = 160
    x2 = jax.random.normal(k_x2, (B, N, F_in), dtype=jnp.float32)
    a2_raw = jax.random.uniform(k_a2, (B, N, N), dtype=jnp.float32)
    adj2 = a2_raw / jnp.sum(a2_raw, axis=-1, keepdims=True)
    weight2, bias2 = init_gcn_params(k_p2, F_in, F_out2, bias=True)

    out2 = jax.block_until_ready(graph_convolution(x2, adj2, weight2, bias2))
    ref2 = jnp.einsum("bij,bjk->bik", adj2, x2 @ weight2) + bias2[None, None, :]
    assert out2.shape == (B, N, F_out2)
    assert jnp.allclose(out2, ref2, atol=2e-2, rtol=2e-2)

    # ---- Case 3: larger graph -> node tiling + two-stage fallback path ----------
    B3, N3, F_in3, F_out3 = 1, 384, 256, 128
    x3 = jax.random.normal(k_x3, (B3, N3, F_in3), dtype=jnp.float32)
    a3_raw = jax.random.uniform(k_a3, (B3, N3, N3), dtype=jnp.float32)
    adj3 = a3_raw / jnp.sum(a3_raw, axis=-1, keepdims=True)
    weight3, _ = init_gcn_params(k_p3, F_in3, F_out3, bias=False)

    out3 = jax.block_until_ready(graph_convolution(x3, adj3, weight3, None))
    ref3 = jnp.einsum("bij,bjk->bik", adj3, x3 @ weight3)
    assert out3.shape == (B3, N3, F_out3)
    assert jnp.allclose(out3, ref3, atol=2e-2, rtol=2e-2)

    print("KERNEL_OK")
</pallas_src>

<mosaic_0001>
module attributes {stable_mosaic.version = 11 : i64} {
  func.func @_fused_xw_adj_kernel(%arg0: i32, %arg1: i32, %arg2: i32, %arg3: memref<1x8x8xf32, #tpu.memory_space<vmem>>, %arg4: memref<1x8x128xbf16, #tpu.memory_space<vmem>>, %arg5: memref<128x128xbf16, #tpu.memory_space<vmem>>, %arg6: memref<1x128xf32, #tpu.memory_space<vmem>>, %arg7: memref<1x8x128xf32, #tpu.memory_space<vmem>>, %arg8: memref<8x128xf32, #tpu.memory_space<vmem>>) attributes {dimension_semantics = [#tpu.dimension_semantics<parallel>, #tpu.dimension_semantics<parallel>, #tpu.dimension_semantics<arbitrary>], iteration_bounds = array<i64: 2, 1, 1>, scalar_prefetch = 0 : i64, scratch_operands = 1 : i64, tpu.core_type = #tpu.core_type<tc>, window_params = [{transform_indices = @transform_0, window_bounds = array<i64: 1, 8, 8>}, {transform_indices = @transform_1, window_bounds = array<i64: 1, 8, 128>}, {pipeline_mode = #tpu.pipeline_mode<synchronous>, transform_indices = @transform_2, window_bounds = array<i64: 128, 128>}, {pipeline_mode = #tpu.pipeline_mode<synchronous>, transform_indices = @transform_3, window_bounds = array<i64: 1, 128>}, {transform_indices = @transform_4, window_bounds = array<i64: 1, 8, 128>}]} {
    %c0_i32 = arith.constant 0 : i32
    %0 = arith.cmpi eq, %arg2, %c0_i32 : i32
    %1 = arith.extui %0 : i1 to i32
    %c0_i32_0 = arith.constant 0 : i32
    %2 = arith.cmpi ne, %1, %c0_i32_0 : i32
    scf.if %2 {
      %cst_15 = arith.constant 0.000000e+00 : f32
      %18 = vector.broadcast %cst_15 : f32 to vector<8x128xf32>
      %c0_16 = arith.constant 0 : index
      %c0_17 = arith.constant 0 : index
      %19 = vector.load %arg8[%c0_16, %c0_17] : memref<8x128xf32, #tpu.memory_space<vmem>>, vector<8x128xf32>
      tpu.vector_store %arg8[%c0_16, %c0_17], %18 {strides = array<i32>} : memref<8x128xf32, #tpu.memory_space<vmem>>, vector<8x128xf32>,
    } else {
    }
    %c0 = arith.constant 0 : index
    %c0_1 = arith.constant 0 : index
    %c0_2 = arith.constant 0 : index
    %3 = vector.load %arg4[%c0, %c0_1, %c0_2] : memref<1x8x128xbf16, #tpu.memory_space<vmem>>, vector<1x8x128xbf16>
    %4 = vector.shape_cast %3 : vector<1x8x128xbf16> to vector<8x128xbf16>
    %c0_3 = arith.constant 0 : index
    %c0_4 = arith.constant 0 : index
    %5 = vector.load %arg5[%c0_3, %c0_4] : memref<128x128xbf16, #tpu.memory_space<vmem>>, vector<128x128xbf16>
    %cst = arith.constant dense<0.000000e+00> : vector<8x128xf32>
    %6 = tpu.matmul %4, %5, %cst {dimension_numbers = #tpu.dot_dimension_numbers<[1], [0], [0], [1], [0, 0, 1, 1], [], []>} : vector<8x128xbf16>, vector<128x128xbf16>, vector<8x128xf32> -> vector<8x128xf32>
    %c0_5 = arith.constant 0 : index
    %c0_6 = arith.constant 0 : index
    %7 = vector.load %arg8[%c0_5, %c0_6] : memref<8x128xf32, #tpu.memory_space<vmem>>, vector<8x128xf32>
    %c0_7 = arith.constant 0 : index
    %c0_8 = arith.constant 0 : index
    %c0_9 = arith.constant 0 : index
    %8 = vector.load %arg3[%c0_7, %c0_8, %c0_9] : memref<1x8x8xf32, #tpu.memory_space<vmem>>, vector<1x8x8xf32>
    %9 = vector.shape_cast %8 : vector<1x8x8xf32> to vector<8x8xf32>
    %10 = arith.truncf %9 : vector<8x8xf32> to vector<8x8xbf16>
    %11 = arith.truncf %6 : vector<8x128xf32> to vector<8x128xbf16>
    %cst_10 = arith.constant dense<0.000000e+00> : vector<8x128xf32>
    %12 = tpu.matmul %10, %11, %cst_10 {dimension_numbers = #tpu.dot_dimension_numbers<[1], [0], [0], [1], [0, 0, 1, 1], [], []>} : vector<8x8xbf16>, vector<8x128xbf16>, vector<8x128xf32> -> vector<8x128xf32>
    %13 = arith.addf %7, %12 : vector<8x128xf32>
    %c0_11 = arith.constant 0 : index
    %c0_12 = arith.constant 0 : index
    %14 = vector.load %arg8[%c0_11, %c0_12] : memref<8x128xf32, #tpu.memory_space<vmem>>, vector<8x128xf32>
    tpu.vector_store %arg8[%c0_11, %c0_12], %13 {strides = array<i32>} : memref<8x128xf32, #tpu.memory_space<vmem>>, vector<8x128xf32>,
    %c0_i32_13 = arith.constant 0 : i32
    %15 = arith.cmpi eq, %arg2, %c0_i32_13 : i32
    %16 = arith.extui %15 : i1 to i32
    %c0_i32_14 = arith.constant 0 : i32
    %17 = arith.cmpi ne, %16, %c0_i32_14 : i32
    scf.if %17 {
      %c0_15 = arith.constant 0 : index
      %c0_16 = arith.constant 0 : index
      %18 = vector.load %arg8[%c0_15, %c0_16] : memref<8x128xf32, #tpu.memory_space<vmem>>, vector<8x128xf32>
      %c0_17 = arith.constant 0 : index
      %c0_18 = arith.constant 0 : index
      %19 = vector.load %arg6[%c0_17, %c0_18] : memref<1x128xf32, #tpu.memory_space<vmem>>, vector<1x128xf32>
      %20 = vector.broadcast %19 : vector<1x128xf32> to vector<8x128xf32>
      %21 = arith.addf %18, %20 : vector<8x128xf32>
      %c0_19 = arith.constant 0 : index
      %c0_20 = arith.constant 0 : index
      %c0_21 = arith.constant 0 : index
      %22 = vector.load %arg7[%c0_19, %c0_20, %c0_21] : memref<1x8x128xf32, #tpu.memory_space<vmem>>, vector<1x8x128xf32>
      %23 = vector.shape_cast %22 : vector<1x8x128xf32> to vector<8x128xf32>
      %24 = vector.shape_cast %21 : vector<8x128xf32> to vector<1x8x128xf32>
      tpu.vector_store %arg7[%c0_19, %c0_20, %c0_21], %24 {strides = array<i32>} : memref<1x8x128xf32, #tpu.memory_space<vmem>>, vector<1x8x128xf32>,
    } else {
    }
    return
  }
  func.func @transform_0(%arg0: i32, %arg1: i32, %arg2: i32) -> (i32, i32, i32) {
    %c0_i32 = arith.constant 0 : i32
    return %arg0, %arg1, %arg2 : i32, i32, i32
  }
  func.func @transform_1(%arg0: i32, %arg1: i32, %arg2: i32) -> (i32, i32, i32) {
    %c0_i32 = arith.constant 0 : i32
    %c0_i32_0 = arith.constant 0 : i32
    return %arg0, %arg2, %c0_i32 : i32, i32, i32
  }
  func.func @transform_2(%arg0: i32, %arg1: i32, %arg2: i32) -> (i32, i32) {
    %c0_i32 = arith.constant 0 : i32
    %c0_i32_0 = arith.constant 0 : i32
    %c0_i32_1 = arith.constant 0 : i32
    return %c0_i32, %c0_i32_0 : i32, i32
  }
  func.func @transform_3(%arg0: i32, %arg1: i32, %arg2: i32) -> (i32, i32) {
    %c0_i32 = arith.constant 0 : i32
    %c0_i32_0 = arith.constant 0 : i32
    %c0_i32_1 = arith.constant 0 : i32
    return %c0_i32, %c0_i32_0 : i32, i32
  }
  func.func @transform_4(%arg0: i32, %arg1: i32, %arg2: i32) -> (i32, i32, i32) {
    %c0_i32 = arith.constant 0 : i32
    %c0_i32_0 = arith.constant 0 : i32
    return %arg0, %arg1, %c0_i32 : i32, i32, i32
  }
}

</mosaic_0001>

<llo_original>
// kernel: graph_convolution.1
$region0: #{graph_convolution.1}
  #allocation0 [shape = 'u32[]', space=smem, size = 0x4, offset = 0x4, fixed_abs, tag = 'smem constant byte address 0x4 - core index']
  #allocation1 [shape = 'u32[144,128]{1,0:T(1,128)}', space=vmem, size = 0x12000, scoped, tag = 'internal scratch']
  #allocation2 [shape = 'f32[8,128]{1,0:T(8,128)}', space=vmem, size = 0x1000, scoped, tag = 'scratch operand']
  %s0 = inlined_call_operand.vmem [shape: f32[2,8,8], index: 0, kind: input, shape index: {}]
  %s1 = inlined_call_operand.vmem [shape: bf16[2,8,128], index: 1, kind: input, shape index: {}]
  %s2 = inlined_call_operand.vmem [shape: bf16[128,128], index: 2, kind: input, shape index: {}]
  %s3 = inlined_call_operand.vmem [shape: f32[1,128], index: 3, kind: input, shape index: {}]
  %s4 = inlined_call_operand.hbm [shape: f32[2,8,128], index: 4, kind: output, shape index: {}]
  %s5 = sld [smem:[#allocation0]]
  $region57: #{graph_convolution.1} parent=0
    _
  %s7 = ssub.s32 1, %s5
  %s8 = scalar_select 0, %s7, %s5
  $region1: #{graph_convolution.1} parent=0
    #allocation3 [shape = 'u8[8192]{0}', space=vmem, size = 0x2000, scoped, tag = 'output window, operand 0']
    #allocation4 [shape = 's32[2]{0}', space=sflag, size = 0x8, scoped, tag = 'scoped memory for graph_convolution.1']
    %9 = vsyncpa [#allocation4], 0
    %s10 = scalar_lea.sflag [#allocation4], 1
    %11 = vsyncpa %s10, 0
    loop: start=0, step=1, limit=4
    $region2: #{graph_convolution.1} parent=1 // loop_pre_header
      _
    $region3: #{graph_convolution.1} parent=1 // loop_header
      %s13 = sphi 0, %s17
      %p14 = scmp.ge.s32.totalorder %s13, 4
      %s20 = sphi 0, %s39
      %s21 = sphi 0, %s35
      %s22 = sphi 0, %s31
      %s23 = sphi 0, %s20
      %s24 = sphi 0, %s21
      %s25 = sphi 0, %s22
      %s26 = sphi 0, %s23
      %s27 = sphi 0, %s24
      %s28 = sphi 0, %s25
      %s46 = sphi 0, %s48
      %s49 = sphi 0, %s46
      %s50 = sphi 0, %s49
      %s66 = sphi 0, %s50
      %s74 = sphi 0, %s76
      %s77 = sphi 0, %s74
      %s78 = sphi 0, %s77
      %s94 = sphi 0, %s78
      %s98 = sphi 0, %s98
      %s100 = sphi 0, %s98
      %s101 = sphi 0, %s100
      %s115 = sphi 0, %s101
      %s119 = sphi 0, %s119
      %s121 = sphi 0, %s119
      %s122 = sphi 0, %s121
      %s136 = sphi 0, %s122
      %s144 = sphi 0, %s146
      %s147 = sphi 0, %s144
      %s148 = sphi 0, %s147
      %s164 = sphi 0, %s148
    $region4: #{graph_convolution.1} parent=1 // loop_header_branch
      %16 = sbr.rel (%p14) target = $region8
    $region5: #{graph_convolution.1} parent=1 // loop_body
      %s18 = ssub.s32 %s13, 1
      %s19 = ssub.s32 %s13, 2
      %s29 = sadd.s32 1, %s22
      %p30 = scmp.ge.s32.totalorder %s29, 1
      %s31 = scalar_select %p30, 0, %s29
      %s32 = sadd.s32 1, %s21
      %s33 = scalar_select %p30, %s32, %s21
      %p34 = scmp.ge.s32.totalorder %s33, 1
      %s35 = scalar_select %p34, 0, %s33
      %s36 = sadd.s32 1, %s20
      %s37 = scalar_select %p34, %s36, %s20
      %p38 = scmp.ge.s32.totalorder %s37, 2
      %s39 = scalar_select %p38, 0, %s37
      %s40 = ssub.s32 %s20, %s39
      %s41 = ssub.s32 %s21, %s35
      %s42 = sor.u32 %s40, %s41
      %s43 = ssub.s32 %s22, %s31
      %s44 = sor.u32 %s42, %s43
      %p45 = scmp.eq.s32.totalorder %s44, 0
      %s47 = sadd.s32 %s46, 1
      %s48 = scalar_select %p45, %s46, %s47
      %p51 = pneg %p45
      %p52 = scmp.eq.s32.totalorder %s13, 1
      %p53 = por %p51, %p52
      %p54 = scmp.ne.s32.totalorder %s46, %s49
      %p55 = scmp.eq.s32.totalorder %s13, 0
      %p56 = por %p54, %p55
      %p57 = scmp.ne.s32.totalorder %s46, %s49
      %p58 = scmp.eq.s32.totalorder %s18, 1
      %p59 = por %p57, %p58
      %p60 = scmp.ne.s32.totalorder %s49, %s50
      %p61 = scmp.eq.s32.totalorder %s18, 0
      %p62 = por %p60, %p61
      %p63 = scmp.ne.s32.totalorder %s49, %s50
      %p64 = scmp.eq.s32.totalorder %s19, 1
      %p65 = por %p63, %p64
      %p67 = scmp.ne.s32.totalorder %s50, %s66
      %p68 = scmp.eq.s32.totalorder %s19, 0
      %p69 = por %p67, %p68
      %s70 = ssub.s32 %s20, %s39
      %s71 = ssub.s32 %s22, %s31
      %s72 = sor.u32 %s70, %s71
      %p73 = scmp.eq.s32.totalorder %s72, 0
      %s75 = sadd.s32 %s74, 1
      %s76 = scalar_select %p73, %s74, %s75
      %p79 = pneg %p73
      %p80 = scmp.eq.s32.totalorder %s13, 1
      %p81 = por %p79, %p80
      %p82 = scmp.ne.s32.totalorder %s74, %s77
      %p83 = scmp.eq.s32.totalorder %s13, 0
      %p84 = por %p82, %p83
      %p85 = scmp.ne.s32.totalorder %s74, %s77
      %p86 = scmp.eq.s32.totalorder %s18, 1
      %p87 = por %p85, %p86
      %p88 = scmp.ne.s32.totalorder %s77, %s78
      %p89 = scmp.eq.s32.totalorder %s18, 0
      %p90 = por %p88, %p89
      %p91 = scmp.ne.s32.totalorder %s77, %s78
      %p92 = scmp.eq.s32.totalorder %s19, 1
      %p93 = por %p91, %p92
      %p95 = scmp.ne.s32.totalorder %s78, %s94
      %p96 = scmp.eq.s32.totalorder %s19, 0
      %p97 = por %p95, %p96
      %s99 = sadd.s32 %s98, 1
      %p102 = scmp.eq.s32.totalorder %s13, 1
      %p103 = scmp.ne.s32.totalorder %s98, %s100
      %p104 = scmp.eq.s32.totalorder %s13, 0
      %p105 = por %p103, %p104
      %p106 = scmp.ne.s32.totalorder %s98, %s100
      %p107 = scmp.eq.s32.totalorder %s18, 1
      %p108 = por %p106, %p107
      %p109 = scmp.ne.s32.totalorder %s100, %s101
      %p110 = scmp.eq.s32.totalorder %s18, 0
      %p111 = por %p109, %p110
      %p112 = scmp.ne.s32.totalorder %s100, %s101
      %p113 = scmp.eq.s32.totalorder %s19, 1
      %p114 = por %p112, %p113
      %p116 = scmp.ne.s32.totalorder %s101, %s115
      %p117 = scmp.eq.s32.totalorder %s19, 0
      %p118 = por %p116, %p117
      %s120 = sadd.s32 %s119, 1
      %p123 = scmp.eq.s32.totalorder %s13, 1
      %p124 = scmp.ne.s32.totalorder %s119, %s121
      %p125 = scmp.eq.s32.totalorder %s13, 0
      %p126 = por %p124, %p125
      %p127 = scmp.ne.s32.totalorder %s119, %s121
      %p128 = scmp.eq.s32.totalorder %s18, 1
      %p129 = por %p127, %p128
      %p130 = scmp.ne.s32.totalorder %s121, %s122
      %p131 = scmp.eq.s32.totalorder %s18, 0
      %p132 = por %p130, %p131
      %p133 = scmp.ne.s32.totalorder %s121, %s122
      %p134 = scmp.eq.s32.totalorder %s19, 1
      %p135 = por %p133, %p134
      %p137 = scmp.ne.s32.totalorder %s122, %s136
      %p138 = scmp.eq.s32.totalorder %s19, 0
      %p139 = por %p137, %p138
      %s140 = ssub.s32 %s20, %s39
      %s141 = ssub.s32 %s21, %s35
      %s142 = sor.u32 %s140, %s141
      %p143 = scmp.eq.s32.totalorder %s142, 0
      %s145 = sadd.s32 %s144, 1
      %s146 = scalar_select %p143, %s144, %s145
      %p149 = pneg %p143
      %p150 = scmp.eq.s32.totalorder %s13, 1
      %p151 = por %p149, %p150
      %p152 = scmp.ne.s32.totalorder %s144, %s147
      %p153 = scmp.eq.s32.totalorder %s13, 0
      %p154 = por %p152, %p153
      %p155 = scmp.ne.s32.totalorder %s144, %s147
      %p156 = scmp.eq.s32.totalorder %s18, 1
      %p157 = por %p155, %p156
      %p158 = scmp.ne.s32.totalorder %s147, %s148
      %p159 = scmp.eq.s32.totalorder %s18, 0
      %p160 = por %p158, %p159
      %p161 = scmp.ne.s32.totalorder %s147, %s148
      %p162 = scmp.eq.s32.totalorder %s19, 1
      %p163 = por %p161, %p162
      %p165 = scmp.ne.s32.totalorder %s148, %s164
      %p166 = scmp.eq.s32.totalorder %s19, 0
      %p167 = por %p165, %p166
      %p168 = scmp.le.s32.totalorder 1, %s13
      %p169 = scmp.lt.s32.totalorder %s13, 3
      %p170 = pnand %p168, %p169
      %p171 = pneg %p170
      // Predicated region
      $region9: #{graph_convolution.1} parent=5 // pred_check
        _
      $region10: #{graph_convolution.1} parent=5 // pred_check_branch
        %173 = sbr.rel (%p170) target = $region12
      $region11: #{graph_convolution.1} parent=5 // pred_region
        %s174 = ssub.s32 %s13, 1
        // Predicated region
        $region13: #{graph_convolution.1} parent=11 // pred_check
          %p175 = pneg %p111
        $region14: #{graph_convolution.1} parent=11 // pred_check_branch
          %177 = sbr.rel (%p175) target = $region16
        $region15: #{graph_convolution.1} parent=11 // pred_region
          _
        $region16: #{graph_convolution.1} parent=11 // pred_fallthru
          _
        // Predicated region
        $region17: #{graph_convolution.1} parent=11 // pred_check
          %p178 = pneg %p132
        $region18: #{graph_convolution.1} parent=11 // pred_check_branch
          %180 = sbr.rel (%p178) target = $region20
        $region19: #{graph_convolution.1} parent=11 // pred_region
          _
        $region20: #{graph_convolution.1} parent=11 // pred_fallthru
          _
      $region12: #{graph_convolution.1} parent=5 // pred_fallthru
        _
      %p181 = scmp.lt.s32.totalorder %s13, 2
      // Predicated region
      $region21: #{graph_convolution.1} parent=5 // pred_check
        %p182 = pneg %p181
      $region22: #{graph_convolution.1} parent=5 // pred_check_branch
        %184 = sbr.rel (%p182) target = $region24
      $region23: #{graph_convolution.1} parent=5 // pred_region
        // Predicated region
        $region25: #{graph_convolution.1} parent=23 // pred_check
          %p185 = pneg %p56
        $region26: #{graph_convolution.1} parent=23 // pred_check_branch
          %187 = sbr.rel (%p185) target = $region28
        $region27: #{graph_convolution.1} parent=23 // pred_region
          %p188 = scmp.lt.s32.totalorder %s20, 1
          %s189 = scalar_select %p188, %s20, 1
          %p190 = scmp.lt.s32.totalorder %s21, 0
          %s191 = scalar_select %p190, %s21, 0
          %p192 = scmp.lt.s32.totalorder %s22, 0
          %s193 = scalar_select %p192, %s22, 0
          %s194 = sadd.s32 %s193, %s191
          %s195 = sadd.s32 %s194, %s189
          %s196 = smul.addr %s195, 8
          %s197 = scalar_lea.vmem %s0, %s196
        $region28: #{graph_convolution.1} parent=23 // pred_fallthru
          _
        // Predicated region
        $region29: #{graph_convolution.1} parent=23 // pred_check
          %p198 = pneg %p84
        $region30: #{graph_convolution.1} parent=23 // pred_check_branch
          %200 = sbr.rel (%p198) target = $region32
        $region31: #{graph_convolution.1} parent=23 // pred_region
          %p201 = scmp.lt.s32.totalorder %s20, 1
          %s202 = scalar_select %p201, %s20, 1
          %p203 = scmp.lt.s32.totalorder %s22, 0
          %s204 = scalar_select %p203, %s22, 0
          %s205 = sadd.s32 %s204, %s202
          %s206 = smul.addr %s205, 4
          %s207 = scalar_lea.vmem %s1, %s206
        $region32: #{graph_convolution.1} parent=23 // pred_fallthru
          _
      $region24: #{graph_convolution.1} parent=5 // pred_fallthru
        _
      %p208 = scmp.le.s32.totalorder 1, %s13
      %p209 = scmp.lt.s32.totalorder %s13, 3
      %p210 = pnand %p208, %p209
      %p211 = pneg %p210
      // Predicated region
      $region33: #{graph_convolution.1} parent=5 // pred_check
        _
      $region34: #{graph_convolution.1} parent=5 // pred_check_branch
        %213 = sbr.rel (%p210) target = $region36
      $region35: #{graph_convolution.1} parent=5 // pred_region
        %s214 = ssub.s32 %s13, 1
        %p215 = scmp.lt.s32.totalorder %s23, 1
        %s216 = scalar_select %p215, %s23, 1
        %p217 = scmp.lt.s32.totalorder %s24, 0
        %s218 = scalar_select %p217, %s24, 0
        %p219 = scmp.lt.s32.totalorder %s25, 0
        %s220 = scalar_select %p219, %s25, 0
        %s221 = sadd.s32 %s220, %s218
        %s222 = sadd.s32 %s221, %s216
        %s223 = smul.addr %s222, 8
        %s224 = scalar_lea.vmem %s0, %s223
        %p225 = pneg %p62
        %p226 = pneg %p59
        %p227 = scmp.lt.s32.totalorder %s23, 1
        %s228 = scalar_select %p227, %s23, 1
        %p229 = scmp.lt.s32.totalorder %s25, 0
        %s230 = scalar_select %p229, %s25, 0
        %s231 = sadd.s32 %s230, %s228
        %s232 = smul.addr %s231, 4
        %s233 = scalar_lea.vmem %s1, %s232
        %p234 = pneg %p90
        %p235 = pneg %p87
        %p236 = pneg %p111
        %p237 = pneg %p108
        %p238 = pneg %p132
        %p239 = pneg %p129
        %p240 = pneg %p160
        %p241 = pneg %p157
        %s242 = sand.u32 %s147, 1
        %s243 = scalar_lea.sflag [#allocation4], %s242
        %s244 = sand.u32 %s147, 1
        %s245 = smul.addr %s244, 8
        %s246 = scalar_lea.vmem [#allocation3], %s245
        %p247 = scmp.lt.s32.totalorder %s23, 1
        %s248 = scalar_select %p247, %s23, 1
        %p249 = scmp.lt.s32.totalorder %s24, 0
        %s250 = scalar_select %p249, %s24, 0
        %p251 = scmp.lt.s32.totalorder %s25, 0
        %s252 = scalar_select %p251, %s25, 0
        %s253 = sadd.s32 %s252, %s250
        %s254 = sadd.s32 %s253, %s248
        %s255 = smul.addr %s254, 8
        %s256 = scalar_lea.vmem %s0, %s255
        %p257 = scmp.lt.s32.totalorder %s23, 1
        %s258 = scalar_select %p257, %s23, 1
        %p259 = scmp.lt.s32.totalorder %s25, 0
        %s260 = scalar_select %p259, %s25, 0
        %s261 = sadd.s32 %s260, %s258
        %s262 = smul.addr %s261, 4
        %s263 = scalar_lea.vmem %s1, %s262
        %p265 = scmp.eq.s32.totalorder %s25, 0
        // Predicated region
        $region37: #{graph_convolution.1} parent=35 // pred_check
          %p266 = pneg %p265
        $region38: #{graph_convolution.1} parent=35 // pred_check_branch
          %268 = sbr.rel (%p266) target = $region40
        $region39: #{graph_convolution.1} parent=35 // pred_region
          %269 = vst [vmem:[#allocation2] sm:$0xff] 0.0
        $region40: #{graph_convolution.1} parent=35 // pred_fallthru
          _
        %v270 = vld [vmem:[%s263] sm:$0xf]
        %v271 = vld [vmem:[%s2] sm:$0xf]
        %v272 = vld [vmem:[%s2 + $0x4] sm:$0xf]
        %v273 = vld [vmem:[%s2 + $0x8] sm:$0xf]
        %v274 = vld [vmem:[%s2 + $0xc] sm:$0xf]
        %v275 = vld [vmem:[%s2 + $0x10] sm:$0xf]
        %v276 = vld [vmem:[%s2 + $0x14] sm:$0xf]
        %v277 = vld [vmem:[%s2 + $0x18] sm:$0xf]
        %v278 = vld [vmem:[%s2 + $0x1c] sm:$0xf]
        %v279 = vld [vmem:[%s2 + $0x20] sm:$0xf]
        %v280 = vld [vmem:[%s2 + $0x24] sm:$0xf]
        %v281 = vld [vmem:[%s2 + $0x28] sm:$0xf]
        %v282 = vld [vmem:[%s2 + $0x2c] sm:$0xf]
        %v283 = vld [vmem:[%s2 + $0x30] sm:$0xf]
        %v284 = vld [vmem:[%s2 + $0x34] sm:$0xf]
        %v285 = vld [vmem:[%s2 + $0x38] sm:$0xf]
        %v286 = vld [vmem:[%s2 + $0x3c] sm:$0xf]
        %v303 = vunpack.c.l.b16 %v271
        %v304 = vunpack.c.l.b16 %v272
        %v305 = vunpack.c.l.b16 %v273
        %v306 = vunpack.c.l.b16 %v274
        %v307 = vunpack.c.l.b16 %v275
        %v308 = vunpack.c.l.b16 %v276
        %v309 = vunpack.c.l.b16 %v277
        %v310 = vunpack.c.l.b16 %v278
        %v311 = vunpack.c.l.b16 %v279
        %v312 = vunpack.c.l.b16 %v280
        %v313 = vunpack.c.l.b16 %v281
        %v314 = vunpack.c.l.b16 %v282
        %v315 = vunpack.c.l.b16 %v283
        %v316 = vunpack.c.l.b16 %v284
        %v317 = vunpack.c.l.b16 %v285
        %v318 = vunpack.c.l.b16 %v286
        %v319 = vpack.c.b16 %v304, %v303
        %v320 = vpack.c.b16 %v306, %v305
        %v321 = vpack.c.b16 %v308, %v307
        %v322 = vpack.c.b16 %v310, %v309
        %v323 = vpack.c.b16 %v312, %v311
        %v324 = vpack.c.b16 %v314, %v313
        %v325 = vpack.c.b16 %v316, %v315
        %v326 = vpack.c.b16 %v318, %v317
        %335 = vmatprep.subr.bf16.mxu0 0
        %336 = vmatpush1.bf16.msra.mxu0 %v326
        %337 = vmatprep.subr.bf16.mxu0 0
        %338 = vmatpush1.bf16.msra.mxu0 %v325
        %339 = vmatprep.subr.bf16.mxu0 0
        %340 = vmatpush1.bf16.msra.mxu0 %v324
        %341 = vmatprep.subr.bf16.mxu0 0
        %342 = vmatpush1.bf16.msra.mxu0 %v323
        %343 = vmatprep.subr.bf16.mxu0 0
        %344 = vmatpush1.bf16.msra.mxu0 %v322
        %345 = vmatprep.subr.bf16.mxu0 0
        %346 = vmatpush1.bf16.msra.mxu0 %v321
        %347 = vmatprep.subr.bf16.mxu0 0
        %348 = vmatpush1.bf16.msra.mxu0 %v320
        %349 = vmatprep.subr.bf16.mxu0 0
        %350 = vmatpush1.bf16.msra.mxu0 %v319
        %351 = vmatprep.subr.bf16.mxu0 0
        %352 = vmatpush2.bf16.msra.mxu0 0
        %353 = vmatprep.subr.bf16.mxu0 0
        %354 = vmatpush2.bf16.msra.mxu0 0
        %355 = vmatprep.subr.bf16.mxu0 0
        %356 = vmatpush2.bf16.msra.mxu0 0
        %357 = vmatprep.subr.bf16.mxu0 0
        %358 = vmatpush2.bf16.msra.mxu0 0
        %359 = vmatprep.subr.bf16.mxu0 0
        %360 = vmatpush2.bf16.msra.mxu0 0
        %361 = vmatprep.subr.bf16.mxu0 0
        %362 = vmatpush2.bf16.msra.mxu0 0
        %363 = vmatprep.subr.bf16.mxu0 0
        %364 = vmatpush2.bf16.msra.mxu0 0
        %365 = vmatprep.subr.bf16.mxu0 0
        %366 = vmatpush2.bf16.msra.mxu0 0
        %367 = vmatprep.mubr.bf16.mxu0 0
        %368 = vmatmul.mubr.bf16.gmra.mxu0 %v270
        %v369 = vpop.f32.mrf.mxu0
        %v370 = vadd.f32 0.0, %v369
        %v371 = vpop.f32.mrf.mxu0
        %v372 = vpop.f32.mrf.mxu0
        %v373 = vpop.f32.mrf.mxu0
        %374 = vdwg.mxu0
        %v375 = vld [vmem:[#allocation2] sm:$0xff]
        %v376 = vld [vmem:[%s256] sm:$0xff]
        %v377 = vpack.c.bf16 %v376, %v376
        %v378 = vpack.c.bf16 %v370, %v370
        %vm379 = vcmask 64512
        %v381 = vsel %vm379, %v377, 0
        %vm383 = vcmask 1043456
        %v385 = vsel %vm383, %v378, 0
        %387 = vmatprep.subr.bf16.mxu0 0
        %388 = vmatpush1.bf16.msra.mxu0 0
        %389 = vmatprep.subr.bf16.mxu0 0
        %390 = vmatpush1.bf16.msra.mxu0 0
        %391 = vmatprep.subr.bf16.mxu0 0
        %392 = vmatpush1.bf16.msra.mxu0 0
        %393 = vmatprep.subr.bf16.mxu0 0
        %394 = vmatpush1.bf16.msra.mxu0 0
        %395 = vmatprep.subr.bf16.mxu0 0
        %396 = vmatpush1.bf16.msra.mxu0 0
        %397 = vmatprep.subr.bf16.mxu0 0
        %398 = vmatpush1.bf16.msra.mxu0 0
        %399 = vmatprep.subr.bf16.mxu0 0
        %400 = vmatpush1.bf16.msra.mxu0 0
        %401 = vmatprep.subr.bf16.mxu0 0
        %402 = vmatpush1.bf16.msra.mxu0 %v385
        %403 = vmatprep.subr.bf16.mxu0 0
        %404 = vmatpush2.bf16.msra.mxu0 0
        %405 = vmatprep.subr.bf16.mxu0 0
        %406 = vmatpush2.bf16.msra.mxu0 0
        %407 = vmatprep.subr.bf16.mxu0 0
        %408 = vmatpush2.bf16.msra.mxu0 0
        %409 = vmatprep.subr.bf16.mxu0 0
        %410 = vmatpush2.bf16.msra.mxu0 0
        %411 = vmatprep.subr.bf16.mxu0 0
        %412 = vmatpush2.bf16.msra.mxu0 0
        %413 = vmatprep.subr.bf16.mxu0 0
        %414 = vmatpush2.bf16.msra.mxu0 0
        %415 = vmatprep.subr.bf16.mxu0 0
        %416 = vmatpush2.bf16.msra.mxu0 0
        %417 = vmatprep.subr.bf16.mxu0 0
        %418 = vmatpush2.bf16.msra.mxu0 0
        %419 = vmatprep.mubr.bf16.mxu0 0
        %420 = vmatmul.mubr.bf16.gmra.mxu0 %v381
        %v421 = vpop.f32.mrf.mxu0
        %v422 = vadd.f32 0.0, %v421
        %v423 = vpop.f32.mrf.mxu0
        %v424 = vpop.f32.mrf.mxu0
        %v425 = vpop.f32.mrf.mxu0
        %426 = vdwg.mxu0
        %v427 = vadd.f32 %v375, %v422
        %428 = vst [vmem:[#allocation2] sm:$0xff] %v427
        // Predicated region
        $region41: #{graph_convolution.1} parent=35 // pred_check
          %p429 = pneg %p265
        $region42: #{graph_convolution.1} parent=35 // pred_check_branch
          %431 = sbr.rel (%p429) target = $region44
        $region43: #{graph_convolution.1} parent=35 // pred_region
          %v432 = vld [vmem:[#allocation2] sm:$0xff]
          %v433 = vld [vmem:[%s3] sm:$0x1]
          %v435 = vlaneseq
          %v436 = vshrl.u32 %v435, 7
          %v437 = vsub.s32 0, %v436
          %v438 = vrot.slane %v433, %v437
          %v440 = vadd.f32 %v432, %v438
          %441 = vst [vmem:[%s246] sm:$0xff] %v440
        $region44: #{graph_convolution.1} parent=35 // pred_fallthru
          _
        %s442 = sand.u32 %s147, 1
        %s443 = scalar_lea.sflag [#allocation4], %s442
        %s444 = sand.u32 %s147, 1
        %s445 = smul.addr %s444, 8
        %s446 = scalar_lea.vmem [#allocation3], %s445
        // Predicated region
        $region45: #{graph_convolution.1} parent=35 // pred_check
          %p447 = pneg %p157
        $region46: #{graph_convolution.1} parent=35 // pred_check_branch
          %449 = sbr.rel (%p447) target = $region48
        $region47: #{graph_convolution.1} parent=35 // pred_region
          %s451 = ssub.s32 128, 128
          %452 = vsyncadd %s443, %s451
          %s453 = sadd.s32 %s24, %s23
          %s454 = smul.addr %s453, 128
          %s455 = scalar_lea.hbm %s4, %s454
          %s457 = sshll.u32 %s446, 4
          %s458 = int_to_ptr.vmem [resolvable:$true] %s457
          %460 = dma.vmem_to_hbm [thread:$0]  %s458, 128, %s455, %s443
        $region48: #{graph_convolution.1} parent=35 // pred_fallthru
          _
      $region36: #{graph_convolution.1} parent=5 // pred_fallthru
        _
      %p461 = scmp.le.s32.totalorder 2, %s13
      // Predicated region
      $region49: #{graph_convolution.1} parent=5 // pred_check
        %p462 = pneg %p461
      $region50: #{graph_convolution.1} parent=5 // pred_check_branch
        %464 = sbr.rel (%p462) target = $region52
      $region51: #{graph_convolution.1} parent=5 // pred_region
        %s465 = ssub.s32 %s13, 2
        // Predicated region
        $region53: #{graph_convolution.1} parent=51 // pred_check
          %p466 = pneg %p163
        $region54: #{graph_convolution.1} parent=51 // pred_check_branch
          %468 = sbr.rel (%p466) target = $region56
        $region55: #{graph_convolution.1} parent=51 // pred_region
          %s469 = sand.u32 %s148, 1
          %s470 = scalar_lea.sflag [#allocation4], %s469
          %s471 = sand.u32 %s148, 1
          %s472 = smul.addr %s471, 8
          %s473 = scalar_lea.vmem [#allocation3], %s472
          %474 = dma.done %s470, 128
        $region56: #{graph_convolution.1} parent=51 // pred_fallthru
          _
      $region52: #{graph_convolution.1} parent=5 // pred_fallthru
        _
    $region6: #{graph_convolution.1} parent=1 // loop_footer
      %s17 = sadd.s32 1, %s13
    $region7: #{graph_convolution.1} parent=1 // loop_footer_branch
      %12 = sbr.rel target = $region3
    $region8: #{graph_convolution.1} parent=1 // loop_exit
      _
    %475 = vsyncpa [#allocation4], 1
    %s476 = scalar_lea.sflag [#allocation4], 1
    %477 = vsyncpa %s476, 1

</llo_original>
